<compile_context>
chip_gen: v6e
topology: v6e:2x2x1
jax: 0.10.0
libtpu: 0.0.40
codegen_flags: <defaults>
</compile_context>

<pallas_src>
import functools

import jax
import jax.numpy as jnp
import numpy as np
from jax.experimental import pallas as pl
from jax.experimental.pallas import tpu as pltpu


# ----------------------------------------------------------------------------
# host-side constant builders
# ----------------------------------------------------------------------------
def _pool_upsample_aux(H, W):
    """(6, H*W) f32 auxiliary rows.

    rows: 0 w_even mask, 1 h_even mask,
          2 aw_c (self coeff, W-pass), 3 aw_n (neighbor coeff, W-pass),
          4 ah_c (self coeff, H-pass), 5 ah_n (neighbor coeff, H-pass)
    The coefficients act on the 2x2-"replicated" low-res map.  The x2 bilinear
    (align_corners=False) neighbor tap is 0.25 and parity-exclusive (previous
    column for even j, next column for odd j), zeroed at the borders where the
    self coefficient becomes 1.0.
    """
    j = np.arange(W)
    i = np.arange(H)
    w_even = (j % 2 == 0)
    h_even = (i % 2 == 0)
    aw_c = np.where((j == 0) | (j == W - 1), 1.0, 0.75)
    aw_n = np.where((j == 0) | (j == W - 1), 0.0, 0.25)
    ah_c = np.where((i == 0) | (i == H - 1), 1.0, 0.75)
    ah_n = np.where((i == 0) | (i == H - 1), 0.0, 0.25)

    over_w = lambda v: np.tile(np.asarray(v, np.float32), H)     # varies with w
    over_h = lambda v: np.repeat(np.asarray(v, np.float32), W)   # varies with h
    aux = np.stack(
        [over_w(w_even), over_h(h_even),
         over_w(aw_c), over_w(aw_n),
         over_h(ah_c), over_h(ah_n)], axis=0)
    return aux.astype(np.float32)                                # (6, H*W)


def _bilinear_matrix(out_size, in_size):
    """Row-interp matrix matching F.interpolate(mode='bilinear', align_corners=False)."""
    i = jnp.arange(out_size, dtype=jnp.float32)
    src = jnp.maximum((i + 0.5) * (in_size / out_size) - 0.5, 0.0)
    i0 = jnp.floor(src).astype(jnp.int32)
    i1 = jnp.minimum(i0 + 1, in_size - 1)
    w1 = src - i0.astype(jnp.float32)
    rows = jnp.arange(out_size)
    m = jnp.zeros((out_size, in_size), jnp.float32)
    m = m.at[rows, i0].add(1.0 - w1)
    m = m.at[rows, i1].add(w1)
    return m


# ----------------------------------------------------------------------------
# kernel
# ----------------------------------------------------------------------------
def _ara_kernel(x_ref, wr_ref, we_ref, aux_ref, o_ref, *, row):
    # x_ref  : (Bblk, C, HW)  input images, flattened NCHW (lane dim = H*W), native dtype
    # wr_ref : (Cmid_p, C)    channel_reduce weight (zero-padded), x dtype
    # we_ref : (C, Cmid_p)    channel_expand weight (zero-padded), x dtype
    # aux_ref: (6, HW)        parity masks + upsample stencil coefficients, f32
    # o_ref  : (Bblk, C, HW)  native dtype
    # row    : W -- lane distance between vertically adjacent pixels.
    aux = aux_ref[...]
    w_even = aux[0:1] > 0.5                                 # (1, HW)
    h_even = aux[1:2] > 0.5
    awc, awn = aux[2:3], aux[3:4]
    ahc, ahn = aux[4:5], aux[5:6]

    nb = x_ref.shape[0]
    for b in range(nb):                                     # static unroll over the block
        x = x_ref[b]                                        # (C, HW) native dtype

        # 1) channel_reduce (1x1 conv) + ReLU: native-dtype operands, f32 accumulation.
        red = jnp.dot(wr_ref[...], x, preferred_element_type=jnp.float32)
        red = jnp.maximum(red, 0.0)                         # (Cmid_p, HW) f32

        # 2) 2x2 / stride-2 max-pool, kept replicated at full resolution.
        #    (jnp.roll lowers to lane rotates; wrap-around values only ever land
        #     on positions whose parity select takes the other branch.)
        mw = jnp.maximum(red, jnp.roll(red, -1, axis=1))
        mw = jnp.where(w_even, mw, jnp.roll(mw, 1, axis=1))
        mh = jnp.maximum(mw, jnp.roll(mw, -row, axis=1))
        pooled = jnp.where(h_even, mh, jnp.roll(mh, row, axis=1))   # (Cmid_p, HW) f32

        # 3) channel_expand (1x1 conv) + ReLU (still replicated per 2x2 block).
        ex = jnp.dot(we_ref[...], pooled.astype(we_ref.dtype),
                     preferred_element_type=jnp.float32)    # (C, HW) f32
        ex = jnp.maximum(ex, 0.0)

        # 4) x2 bilinear upsample (align_corners=False) as a separable 2-tap
        #    stencil; the neighbor tap is parity-exclusive -> one coeff row per
        #    axis.  Rolls sit on the XLU slot; borders have zero neighbor coeff.
        nbr_w = jnp.where(w_even, jnp.roll(ex, 1, axis=1), jnp.roll(ex, -1, axis=1))
        up = awc * ex + awn * nbr_w
        nbr_h = jnp.where(h_even, jnp.roll(up, row, axis=1), jnp.roll(up, -row, axis=1))
        up = ahc * up + ahn * nbr_h                         # (C, HW) f32

        # 5) sigmoid gate applied to the input; lane-dense store in native dtype.
        o_ref[b] = (x.astype(jnp.float32) * jax.nn.sigmoid(up)).astype(o_ref.dtype)


# ----------------------------------------------------------------------------
# wrapper
# ----------------------------------------------------------------------------
def _choose_batch_block(B, C, HW, itemsize):
    """Largest divisor of B whose per-step VMEM working set fits a conservative
    budget, preferring at least ~1 MiB of in+out traffic per grid step."""
    io_per_img = 2 * C * HW * itemsize          # one image in + out
    live_f32_per_img = 4 * C * HW * 4           # ~4 live full-width f32 temporaries
    budget = 24 << 20                           # safe on v5e/v6e (128 MiB) and v7x (64 MiB)
    target_io = 1 << 20                         # amortize the ~0.35 us per-step overhead
    best = 1
    for d in range(1, B + 1):
        if B % d:
            continue
        step = 2 * d * io_per_img + d * live_f32_per_img    # 2x = double-buffered blocks
        if step > budget:
            break
        best = d
        if d * io_per_img >= target_io:
            break
    return best


def adaptive_resolution_attention(x_nchw, wr, we):
    """x: (B, C, H, W);  wr: (Cmid, C) channel_reduce;  we: (C, Cmid) channel_expand."""
    B, C, H, W = x_nchw.shape
    if H % 2 or W % 2:
        # exact 2x pool / 2x upsample path only.
        raise ValueError("even H and W required")
    Cmid = wr.shape[0]
    Cmid_p = max(8, ((Cmid + 7) // 8) * 8)                  # pad degenerate K/M dim to 8
    HW = H * W                                              # lane-dense if HW % 128 == 0
    dt = x_nchw.dtype
    itemsize = jnp.dtype(dt).itemsize

    x2 = x_nchw.reshape(B, C, HW)                           # native NCHW flatten: free
    wrt = jnp.zeros((Cmid_p, C), dt).at[:Cmid, :].set(wr.astype(dt))
    wet = jnp.zeros((C, Cmid_p), dt).at[:, :Cmid].set(we.astype(dt))
    aux = jnp.asarray(_pool_upsample_aux(H, W))             # (6, HW) f32

    Bblk = _choose_batch_block(B, C, HW, itemsize)
    n_steps = B // Bblk

    # VMEM limit derived from actual block sizes (2x buffered in+out + temps + consts).
    step_bytes = (2 * 2 * Bblk * C * HW * itemsize
                  + Bblk * 4 * C * HW * 4
                  + aux.size * 4 + wrt.size * itemsize + wet.size * itemsize)
    vmem_limit = int(min(max(step_bytes + (8 << 20), 32 << 20), 56 << 20))

    cost = pl.CostEstimate(
        flops=int(B * HW * (4 * C * Cmid_p + 20 * C)),
        transcendentals=int(B * C * HW),
        bytes_accessed=int(2 * B * C * HW * itemsize
                           + aux.size * 4 + (wrt.size + wet.size) * itemsize),
    )

    kernel = functools.partial(_ara_kernel, row=W)
    out = pl.pallas_call(
        kernel,
        out_shape=jax.ShapeDtypeStruct((B, C, HW), dt),
        grid=(n_steps,),
        in_specs=[
            pl.BlockSpec((Bblk, C, HW), lambda b: (b, 0, 0)),
            pl.BlockSpec((Cmid_p, C), lambda b: (0, 0)),    # resident (constant index map)
            pl.BlockSpec((C, Cmid_p), lambda b: (0, 0)),
            pl.BlockSpec((6, HW), lambda b: (0, 0)),
        ],
        out_specs=pl.BlockSpec((Bblk, C, HW), lambda b: (b, 0, 0)),
        compiler_params=pltpu.CompilerParams(
            dimension_semantics=("parallel",),
            vmem_limit_bytes=vmem_limit,
        ),
        cost_estimate=cost,
    )(x2, wrt, wet, aux)
    return out.reshape(B, C, H, W)


# ----------------------------------------------------------------------------
# reference (pure JAX mirror of the PyTorch forward, f32, HIGHEST precision)
# ----------------------------------------------------------------------------
def _reference(x_nchw, wr, we):
    B, C, H, W = x_nchw.shape
    Cmid = wr.shape[0]
    hp = jax.lax.Precision.HIGHEST
    x = x_nchw.astype(jnp.float32)
    wr = wr.astype(jnp.float32)
    we = we.astype(jnp.float32)
    red = jnp.maximum(jnp.einsum('mc,bchw->bmhw', wr, x, precision=hp), 0.0)
    pooled = jnp.max(red.reshape(B, Cmid, H // 2, 2, W // 2, 2), axis=(3, 5))
    ex = jnp.maximum(jnp.einsum('cm,bmhw->bchw', we, pooled, precision=hp), 0.0)
    ah = _bilinear_matrix(H, H // 2)
    aw = _bilinear_matrix(W, W // 2)
    up = jnp.einsum('ih,bchw->bciw', ah, ex, precision=hp)
    up = jnp.einsum('jw,bciw->bcij', aw, up, precision=hp)
    return x * jax.nn.sigmoid(up)


if __name__ == "__main__":
    B, C, H, W = 2, 32, 16, 16          # in_channels=32, reduction=16 -> Cmid=2
    reduction = 16
    Cmid = C // reduction

    key = jax.random.PRNGKey(0)
    kx, kr, ke = jax.random.split(key, 3)
    x = jax.random.normal(kx, (B, C, H, W), dtype=jnp.float32)
    # 1x1 conv weights in conv layout (out_ch, in_ch), deterministic synthetic init.
    wr = jax.random.normal(kr, (Cmid, C), dtype=jnp.float32) * 0.3   # channel_reduce
    we = jax.random.normal(ke, (C, Cmid), dtype=jnp.float32) * 0.3   # channel_expand

    # f32 path (native dtype end-to-end, no down-casts anywhere).
    out = jax.block_until_ready(adaptive_resolution_attention(x, wr, we))
    assert out.shape == (B, C, H, W)
    ref = jax.block_until_ready(_reference(x, wr, we))
    np.testing.assert_allclose(np.asarray(out), np.asarray(ref), rtol=2e-2, atol=2e-2)

    # bf16 path (halved HBM traffic; compute still f32 where it matters).
    x_bf = x.astype(jnp.bfloat16)
    out_bf = jax.block_until_ready(adaptive_resolution_attention(x_bf, wr, we))
    ref_bf = jax.block_until_ready(
        _reference(x_bf.astype(jnp.float32),
                   wr.astype(jnp.bfloat16), we.astype(jnp.bfloat16)))
    np.testing.assert_allclose(np.asarray(out_bf.astype(jnp.float32)),
                               np.asarray(ref_bf), rtol=8e-2, atol=8e-2)

    print("KERNEL_OK")
</pallas_src>

<mosaic_0001>
module attributes {stable_mosaic.version = 11 : i64} {
  func.func @_ara_kernel(%arg0: i32, %arg1: memref<2x32x256xf32, #tpu.memory_space<vmem>>, %arg2: memref<8x32xf32, #tpu.memory_space<vmem>>, %arg3: memref<32x8xf32, #tpu.memory_space<vmem>>, %arg4: memref<6x256xf32, #tpu.memory_space<vmem>>, %arg5: memref<2x32x256xf32, #tpu.memory_space<vmem>>) attributes {dimension_semantics = [#tpu.dimension_semantics<parallel>], iteration_bounds = array<i64: 1>, scalar_prefetch = 0 : i64, scratch_operands = 0 : i64, tpu.core_type = #tpu.core_type<tc>, window_params = [{transform_indices = @transform_0, window_bounds = array<i64: 2, 32, 256>}, {pipeline_mode = #tpu.pipeline_mode<synchronous>, transform_indices = @transform_1, window_bounds = array<i64: 8, 32>}, {pipeline_mode = #tpu.pipeline_mode<synchronous>, transform_indices = @transform_2, window_bounds = array<i64: 32, 8>}, {pipeline_mode = #tpu.pipeline_mode<synchronous>, transform_indices = @transform_3, window_bounds = array<i64: 6, 256>}, {transform_indices = @transform_4, window_bounds = array<i64: 2, 32, 256>}]} {
    %c0 = arith.constant 0 : index
    %c0_0 = arith.constant 0 : index
    %0 = vector.load %arg4[%c0, %c0_0] : memref<6x256xf32, #tpu.memory_space<vmem>>, vector<6x256xf32>
    %1 = vector.extract_strided_slice %0 {offsets = [0, 0], sizes = [1, 256], strides = [1, 1]} : vector<6x256xf32> to vector<1x256xf32>
    %cst = arith.constant 5.000000e-01 : f32
    %2 = vector.broadcast %cst : f32 to vector<1x256xf32>
    %3 = arith.cmpf ogt, %1, %2 : vector<1x256xf32>
    %4 = vector.extract_strided_slice %0 {offsets = [1, 0], sizes = [1, 256], strides = [1, 1]} : vector<6x256xf32> to vector<1x256xf32>
    %cst_1 = arith.constant 5.000000e-01 : f32
    %5 = vector.broadcast %cst_1 : f32 to vector<1x256xf32>
    %6 = arith.cmpf ogt, %4, %5 : vector<1x256xf32>
    %7 = vector.extract_strided_slice %0 {offsets = [2, 0], sizes = [1, 256], strides = [1, 1]} : vector<6x256xf32> to vector<1x256xf32>
    %8 = vector.extract_strided_slice %0 {offsets = [3, 0], sizes = [1, 256], strides = [1, 1]} : vector<6x256xf32> to vector<1x256xf32>
    %9 = vector.extract_strided_slice %0 {offsets = [4, 0], sizes = [1, 256], strides = [1, 1]} : vector<6x256xf32> to vector<1x256xf32>
    %10 = vector.extract_strided_slice %0 {offsets = [5, 0], sizes = [1, 256], strides = [1, 1]} : vector<6x256xf32> to vector<1x256xf32>
    %c0_2 = arith.constant 0 : index
    %c0_3 = arith.constant 0 : index
    %c0_4 = arith.constant 0 : index
    %11 = vector.load %arg1[%c0_2, %c0_3, %c0_4] : memref<2x32x256xf32, #tpu.memory_space<vmem>>, vector<1x32x256xf32>
    %12 = vector.shape_cast %11 : vector<1x32x256xf32> to vector<32x256xf32>
    %c0_5 = arith.constant 0 : index
    %c0_6 = arith.constant 0 : index
    %13 = vector.load %arg2[%c0_5, %c0_6] : memref<8x32xf32, #tpu.memory_space<vmem>>, vector<8x32xf32>
    %cst_7 = arith.constant dense<0.000000e+00> : vector<8x256xf32>
    %14 = tpu.matmul %13, %12, %cst_7 {dimension_numbers = #tpu.dot_dimension_numbers<[1], [0], [0], [1], [0, 0, 1, 1], [], []>} : vector<8x32xf32>, vector<32x256xf32>, vector<8x256xf32> -> vector<8x256xf32>
    %cst_8 = arith.constant 0.000000e+00 : f32
    %15 = vector.broadcast %cst_8 : f32 to vector<8x256xf32>
    %16 = arith.maximumf %14, %15 : vector<8x256xf32>
    %17 = vector.extract_strided_slice %16 {offsets = [0, 1], sizes = [8, 255], strides = [1, 1]} : vector<8x256xf32> to vector<8x255xf32>
    %18 = vector.extract_strided_slice %16 {offsets = [0, 0], sizes = [8, 1], strides = [1, 1]} : vector<8x256xf32> to vector<8x1xf32>
    %19 = tpu.concatenate %17, %18 in 1 : vector<8x255xf32>, vector<8x1xf32> -> vector<8x256xf32>
    %20 = arith.maximumf %16, %19 : vector<8x256xf32>
    %21 = vector.extract_strided_slice %20 {offsets = [0, 255], sizes = [8, 1], strides = [1, 1]} : vector<8x256xf32> to vector<8x1xf32>
    %22 = vector.extract_strided_slice %20 {offsets = [0, 0], sizes = [8, 255], strides = [1, 1]} : vector<8x256xf32> to vector<8x255xf32>
    %23 = tpu.concatenate %21, %22 in 1 : vector<8x1xf32>, vector<8x255xf32> -> vector<8x256xf32>
    %24 = vector.shape_cast %3 : vector<1x256xi1> to vector<1x256xi1>
    %25 = vector.broadcast %24 : vector<1x256xi1> to vector<8x256xi1>
    %26 = arith.select %25, %20, %23 : vector<8x256xi1>, vector<8x256xf32>
    %27 = vector.extract_strided_slice %26 {offsets = [0, 16], sizes = [8, 240], strides = [1, 1]} : vector<8x256xf32> to vector<8x240xf32>
    %28 = vector.extract_strided_slice %26 {offsets = [0, 0], sizes = [8, 16], strides = [1, 1]} : vector<8x256xf32> to vector<8x16xf32>
    %29 = tpu.concatenate %27, %28 in 1 : vector<8x240xf32>, vector<8x16xf32> -> vector<8x256xf32>
    %30 = arith.maximumf %26, %29 : vector<8x256xf32>
    %31 = vector.extract_strided_slice %30 {offsets = [0, 240], sizes = [8, 16], strides = [1, 1]} : vector<8x256xf32> to vector<8x16xf32>
    %32 = vector.extract_strided_slice %30 {offsets = [0, 0], sizes = [8, 240], strides = [1, 1]} : vector<8x256xf32> to vector<8x240xf32>
    %33 = tpu.concatenate %31, %32 in 1 : vector<8x16xf32>, vector<8x240xf32> -> vector<8x256xf32>
    %34 = vector.shape_cast %6 : vector<1x256xi1> to vector<1x256xi1>
    %35 = vector.broadcast %34 : vector<1x256xi1> to vector<8x256xi1>
    %36 = arith.select %35, %30, %33 : vector<8x256xi1>, vector<8x256xf32>
    %c0_9 = arith.constant 0 : index
    %c0_10 = arith.constant 0 : index
    %37 = vector.load %arg3[%c0_9, %c0_10] : memref<32x8xf32, #tpu.memory_space<vmem>>, vector<32x8xf32>
    %cst_11 = arith.constant dense<0.000000e+00> : vector<32x256xf32>
    %38 = tpu.matmul %37, %36, %cst_11 {dimension_numbers = #tpu.dot_dimension_numbers<[1], [0], [0], [1], [0, 0, 1, 1], [], []>} : vector<32x8xf32>, vector<8x256xf32>, vector<32x256xf32> -> vector<32x256xf32>
    %cst_12 = arith.constant 0.000000e+00 : f32
    %39 = vector.broadcast %cst_12 : f32 to vector<32x256xf32>
    %40 = arith.maximumf %38, %39 : vector<32x256xf32>
    %41 = vector.extract_strided_slice %40 {offsets = [0, 255], sizes = [32, 1], strides = [1, 1]} : vector<32x256xf32> to vector<32x1xf32>
    %42 = vector.extract_strided_slice %40 {offsets = [0, 0], sizes = [32, 255], strides = [1, 1]} : vector<32x256xf32> to vector<32x255xf32>
    %43 = tpu.concatenate %41, %42 in 1 : vector<32x1xf32>, vector<32x255xf32> -> vector<32x256xf32>
    %44 = vector.extract_strided_slice %40 {offsets = [0, 1], sizes = [32, 255], strides = [1, 1]} : vector<32x256xf32> to vector<32x255xf32>
    %45 = vector.extract_strided_slice %40 {offsets = [0, 0], sizes = [32, 1], strides = [1, 1]} : vector<32x256xf32> to vector<32x1xf32>
    %46 = tpu.concatenate %44, %45 in 1 : vector<32x255xf32>, vector<32x1xf32> -> vector<32x256xf32>
    %47 = vector.shape_cast %3 : vector<1x256xi1> to vector<1x256xi1>
    %48 = vector.broadcast %47 : vector<1x256xi1> to vector<32x256xi1>
    %49 = arith.select %48, %43, %46 : vector<32x256xi1>, vector<32x256xf32>
    %50 = vector.broadcast %7 : vector<1x256xf32> to vector<32x256xf32>
    %51 = arith.mulf %50, %40 : vector<32x256xf32>
    %52 = vector.broadcast %8 : vector<1x256xf32> to vector<32x256xf32>
    %53 = arith.mulf %52, %49 : vector<32x256xf32>
    %54 = arith.addf %51, %53 : vector<32x256xf32>
    %55 = vector.extract_strided_slice %54 {offsets = [0, 240], sizes = [32, 16], strides = [1, 1]} : vector<32x256xf32> to vector<32x16xf32>
    %56 = vector.extract_strided_slice %54 {offsets = [0, 0], sizes = [32, 240], strides = [1, 1]} : vector<32x256xf32> to vector<32x240xf32>
    %57 = tpu.concatenate %55, %56 in 1 : vector<32x16xf32>, vector<32x240xf32> -> vector<32x256xf32>
    %58 = vector.extract_strided_slice %54 {offsets = [0, 16], sizes = [32, 240], strides = [1, 1]} : vector<32x256xf32> to vector<32x240xf32>
    %59 = vector.extract_strided_slice %54 {offsets = [0, 0], sizes = [32, 16], strides = [1, 1]} : vector<32x256xf32> to vector<32x16xf32>
    %60 = tpu.concatenate %58, %59 in 1 : vector<32x240xf32>, vector<32x16xf32> -> vector<32x256xf32>
    %61 = vector.shape_cast %6 : vector<1x256xi1> to vector<1x256xi1>
    %62 = vector.broadcast %61 : vector<1x256xi1> to vector<32x256xi1>
    %63 = arith.select %62, %57, %60 : vector<32x256xi1>, vector<32x256xf32>
    %64 = vector.broadcast %9 : vector<1x256xf32> to vector<32x256xf32>
    %65 = arith.mulf %64, %54 : vector<32x256xf32>
    %66 = vector.broadcast %10 : vector<1x256xf32> to vector<32x256xf32>
    %67 = arith.mulf %66, %63 : vector<32x256xf32>
    %68 = arith.addf %65, %67 : vector<32x256xf32>
    %69 = arith.negf %68 : vector<32x256xf32>
    %70 = math.exp %69 : vector<32x256xf32>
    %cst_13 = arith.constant 1.000000e+00 : f32
    %71 = vector.broadcast %cst_13 : f32 to vector<32x256xf32>
    %72 = arith.addf %71, %70 : vector<32x256xf32>
    %73 = arith.divf %71, %72 : vector<32x256xf32>
    %74 = arith.mulf %12, %73 : vector<32x256xf32>
    %c0_14 = arith.constant 0 : index
    %c0_15 = arith.constant 0 : index
    %c0_16 = arith.constant 0 : index
    %75 = vector.load %arg5[%c0_14, %c0_15, %c0_16] : memref<2x32x256xf32, #tpu.memory_space<vmem>>, vector<1x32x256xf32>
    %76 = vector.shape_cast %75 : vector<1x32x256xf32> to vector<32x256xf32>
    %77 = vector.shape_cast %74 : vector<32x256xf32> to vector<1x32x256xf32>
    tpu.vector_store %arg5[%c0_14, %c0_15, %c0_16], %77 {strides = array<i32>} : memref<2x32x256xf32, #tpu.memory_space<vmem>>, vector<1x32x256xf32>,
    %c1 = arith.constant 1 : index
    %c0_17 = arith.constant 0 : index
    %c0_18 = arith.constant 0 : index
    %78 = vector.load %arg1[%c1, %c0_17, %c0_18] : memref<2x32x256xf32, #tpu.memory_space<vmem>>, vector<1x32x256xf32>
    %79 = vector.shape_cast %78 : vector<1x32x256xf32> to vector<32x256xf32>
    %c0_19 = arith.constant 0 : index
    %c0_20 = arith.constant 0 : index
    %80 = vector.load %arg2[%c0_19, %c0_20] : memref<8x32xf32, #tpu.memory_space<vmem>>, vector<8x32xf32>
    %cst_21 = arith.constant dense<0.000000e+00> : vector<8x256xf32>
    %81 = tpu.matmul %80, %79, %cst_21 {dimension_numbers = #tpu.dot_dimension_numbers<[1], [0], [0], [1], [0, 0, 1, 1], [], []>} : vector<8x32xf32>, vector<32x256xf32>, vector<8x256xf32> -> vector<8x256xf32>
    %cst_22 = arith.constant 0.000000e+00 : f32
    %82 = vector.broadcast %cst_22 : f32 to vector<8x256xf32>
    %83 = arith.maximumf %81, %82 : vector<8x256xf32>
    %84 = vector.extract_strided_slice %83 {offsets = [0, 1], sizes = [8, 255], strides = [1, 1]} : vector<8x256xf32> to vector<8x255xf32>
    %85 = vector.extract_strided_slice %83 {offsets = [0, 0], sizes = [8, 1], strides = [1, 1]} : vector<8x256xf32> to vector<8x1xf32>
    %86 = tpu.concatenate %84, %85 in 1 : vector<8x255xf32>, vector<8x1xf32> -> vector<8x256xf32>
    %87 = arith.maximumf %83, %86 : vector<8x256xf32>
    %88 = vector.extract_strided_slice %87 {offsets = [0, 255], sizes = [8, 1], strides = [1, 1]} : vector<8x256xf32> to vector<8x1xf32>
    %89 = vector.extract_strided_slice %87 {offsets = [0, 0], sizes = [8, 255], strides = [1, 1]} : vector<8x256xf32> to vector<8x255xf32>
    %90 = tpu.concatenate %88, %89 in 1 : vector<8x1xf32>, vector<8x255xf32> -> vector<8x256xf32>
    %91 = vector.shape_cast %3 : vector<1x256xi1> to vector<1x256xi1>
    %92 = vector.broadcast %91 : vector<1x256xi1> to vector<8x256xi1>
    %93 = arith.select %92, %87, %90 : vector<8x256xi1>, vector<8x256xf32>
    %94 = vector.extract_strided_slice %93 {offsets = [0, 16], sizes = [8, 240], strides = [1, 1]} : vector<8x256xf32> to vector<8x240xf32>
    %95 = vector.extract_strided_slice %93 {offsets = [0, 0], sizes = [8, 16], strides = [1, 1]} : vector<8x256xf32> to vector<8x16xf32>
    %96 = tpu.concatenate %94, %95 in 1 : vector<8x240xf32>, vector<8x16xf32> -> vector<8x256xf32>
    %97 = arith.maximumf %93, %96 : vector<8x256xf32>
    %98 = vector.extract_strided_slice %97 {offsets = [0, 240], sizes = [8, 16], strides = [1, 1]} : vector<8x256xf32> to vector<8x16xf32>
    %99 = vector.extract_strided_slice %97 {offsets = [0, 0], sizes = [8, 240], strides = [1, 1]} : vector<8x256xf32> to vector<8x240xf32>
    %100 = tpu.concatenate %98, %99 in 1 : vector<8x16xf32>, vector<8x240xf32> -> vector<8x256xf32>
    %101 = vector.shape_cast %6 : vector<1x256xi1> to vector<1x256xi1>
    %102 = vector.broadcast %101 : vector<1x256xi1> to vector<8x256xi1>
    %103 = arith.select %102, %97, %100 : vector<8x256xi1>, vector<8x256xf32>
    %c0_23 = arith.constant 0 : index
    %c0_24 = arith.constant 0 : index
    %104 = vector.load %arg3[%c0_23, %c0_24] : memref<32x8xf32, #tpu.memory_space<vmem>>, vector<32x8xf32>
    %cst_25 = arith.constant dense<0.000000e+00> : vector<32x256xf32>
    %105 = tpu.matmul %104, %103, %cst_25 {dimension_numbers = #tpu.dot_dimension_numbers<[1], [0], [0], [1], [0, 0, 1, 1], [], []>} : vector<32x8xf32>, vector<8x256xf32>, vector<32x256xf32> -> vector<32x256xf32>
    %cst_26 = arith.constant 0.000000e+00 : f32
    %106 = vector.broadcast %cst_26 : f32 to vector<32x256xf32>
    %107 = arith.maximumf %105, %106 : vector<32x256xf32>
    %108 = vector.extract_strided_slice %107 {offsets = [0, 255], sizes = [32, 1], strides = [1, 1]} : vector<32x256xf32> to vector<32x1xf32>
    %109 = vector.extract_strided_slice %107 {offsets = [0, 0], sizes = [32, 255], strides = [1, 1]} : vector<32x256xf32> to vector<32x255xf32>
    %110 = tpu.concatenate %108, %109 in 1 : vector<32x1xf32>, vector<32x255xf32> -> vector<32x256xf32>
    %111 = vector.extract_strided_slice %107 {offsets = [0, 1], sizes = [32, 255], strides = [1, 1]} : vector<32x256xf32> to vector<32x255xf32>
    %112 = vector.extract_strided_slice %107 {offsets = [0, 0], sizes = [32, 1], strides = [1, 1]} : vector<32x256xf32> to vector<32x1xf32>
    %113 = tpu.concatenate %111, %112 in 1 : vector<32x255xf32>, vector<32x1xf32> -> vector<32x256xf32>
    %114 = vector.shape_cast %3 : vector<1x256xi1> to vector<1x256xi1>
    %115 = vector.broadcast %114 : vector<1x256xi1> to vector<32x256xi1>
    %116 = arith.select %115, %110, %113 : vector<32x256xi1>, vector<32x256xf32>
    %117 = vector.broadcast %7 : vector<1x256xf32> to vector<32x256xf32>
    %118 = arith.mulf %117, %107 : vector<32x256xf32>
    %119 = vector.broadcast %8 : vector<1x256xf32> to vector<32x256xf32>
    %120 = arith.mulf %119, %116 : vector<32x256xf32>
    %121 = arith.addf %118, %120 : vector<32x256xf32>
    %122 = vector.extract_strided_slice %121 {offsets = [0, 240], sizes = [32, 16], strides = [1, 1]} : vector<32x256xf32> to vector<32x16xf32>
    %123 = vector.extract_strided_slice %121 {offsets = [0, 0], sizes = [32, 240], strides = [1, 1]} : vector<32x256xf32> to vector<32x240xf32>
    %124 = tpu.concatenate %122, %123 in 1 : vector<32x16xf32>, vector<32x240xf32> -> vector<32x256xf32>
    %125 = vector.extract_strided_slice %121 {offsets = [0, 16], sizes = [32, 240], strides = [1, 1]} : vector<32x256xf32> to vector<32x240xf32>
    %126 = vector.extract_strided_slice %121 {offsets = [0, 0], sizes = [32, 16], strides = [1, 1]} : vector<32x256xf32> to vector<32x16xf32>
    %127 = tpu.concatenate %125, %126 in 1 : vector<32x240xf32>, vector<32x16xf32> -> vector<32x256xf32>
    %128 = vector.shape_cast %6 : vector<1x256xi1> to vector<1x256xi1>
    %129 = vector.broadcast %128 : vector<1x256xi1> to vector<32x256xi1>
    %130 = arith.select %129, %124, %127 : vector<32x256xi1>, vector<32x256xf32>
    %131 = vector.broadcast %9 : vector<1x256xf32> to vector<32x256xf32>
    %132 = arith.mulf %131, %121 : vector<32x256xf32>
    %133 = vector.broadcast %10 : vector<1x256xf32> to vector<32x256xf32>
    %134 = arith.mulf %133, %130 : vector<32x256xf32>
    %135 = arith.addf %132, %134 : vector<32x256xf32>
    %136 = arith.negf %135 : vector<32x256xf32>
    %137 = math.exp %136 : vector<32x256xf32>
    %cst_27 = arith.constant 1.000000e+00 : f32
    %138 = vector.broadcast %cst_27 : f32 to vector<32x256xf32>
    %139 = arith.addf %138, %137 : vector<32x256xf32>
    %140 = arith.divf %138, %139 : vector<32x256xf32>
    %141 = arith.mulf %79, %140 : vector<32x256xf32>
    %c1_28 = arith.constant 1 : index
    %c0_29 = arith.constant 0 : index
    %c0_30 = arith.constant 0 : index
    %142 = vector.load %arg5[%c1_28, %c0_29, %c0_30] : memref<2x32x256xf32, #tpu.memory_space<vmem>>, vector<1x32x256xf32>
    %143 = vector.shape_cast %142 : vector<1x32x256xf32> to vector<32x256xf32>
    %144 = vector.shape_cast %141 : vector<32x256xf32> to vector<1x32x256xf32>
    tpu.vector_store %arg5[%c1_28, %c0_29, %c0_30], %144 {strides = array<i32>} : memref<2x32x256xf32, #tpu.memory_space<vmem>>, vector<1x32x256xf32>,
    return
  }
  func.func @transform_0(%arg0: i32) -> (i32, i32, i32) {
    %c0_i32 = arith.constant 0 : i32
    %c0_i32_0 = arith.constant 0 : i32
    %c0_i32_1 = arith.constant 0 : i32
    return %arg0, %c0_i32, %c0_i32_0 : i32, i32, i32
  }
  func.func @transform_1(%arg0: i32) -> (i32, i32) {
    %c0_i32 = arith.constant 0 : i32
    %c0_i32_0 = arith.constant 0 : i32
    %c0_i32_1 = arith.constant 0 : i32
    return %c0_i32, %c0_i32_0 : i32, i32
  }
  func.func @transform_2(%arg0: i32) -> (i32, i32) {
    %c0_i32 = arith.constant 0 : i32
    %c0_i32_0 = arith.constant 0 : i32
    %c0_i32_1 = arith.constant 0 : i32
    return %c0_i32, %c0_i32_0 : i32, i32
  }
  func.func @transform_3(%arg0: i32) -> (i32, i32) {
    %c0_i32 = arith.constant 0 : i32
    %c0_i32_0 = arith.constant 0 : i32
    %c0_i32_1 = arith.constant 0 : i32
    return %c0_i32, %c0_i32_0 : i32, i32
  }
  func.func @transform_4(%arg0: i32) -> (i32, i32, i32) {
    %c0_i32 = arith.constant 0 : i32
    %c0_i32_0 = arith.constant 0 : i32
    %c0_i32_1 = arith.constant 0 : i32
    return %arg0, %c0_i32, %c0_i32_0 : i32, i32, i32
  }
}

</mosaic_0001>

<llo_original>
// kernel: tpu_custom_call.1
$region0: #{tpu_custom_call.1}
  #allocation0 [shape = 'u32[]', space=smem, size = 0x4, offset = 0x4, fixed_abs, tag = 'smem constant byte address 0x4 - core index']
  #allocation1 [shape = 'u32[144,128]{1,0:T(1,128)}', space=vmem, size = 0x12000, scoped, tag = 'internal scratch']
  %s0 = inlined_call_operand.hbm [shape: f32[2,32,256], index: 0, kind: input, shape index: {}]
  %s1 = inlined_call_operand.vmem [shape: f32[8,32], index: 1, kind: input, shape index: {}]
  %s2 = inlined_call_operand.vmem [shape: f32[32,8], index: 2, kind: input, shape index: {}]
  %s3 = inlined_call_operand.vmem [shape: f32[6,256], index: 3, kind: input, shape index: {}]
  %s4 = inlined_call_operand.hbm [shape: f32[2,32,256], index: 4, kind: output, shape index: {}]
  %s5 = sld [smem:[#allocation0]]
  $region30: #{tpu_custom_call.1} parent=0
    _
  %s7 = ssub.s32 1, %s5
  %s8 = scalar_select 0, %s7, %s5
  $region1: #{tpu_custom_call.1} parent=0
    #allocation2 [shape = 'u8[65536]{0}', space=vmem, size = 0x10000, scoped, tag = 'input window, operand 0, single buffered']
    #allocation3 [shape = 's32[1]{0}', space=sflag, size = 0x4, scoped, tag = 'scoped memory for tpu_custom_call.1']
    #allocation4 [shape = 's32[1]{0}', space=sflag, size = 0x4, scoped, tag = 'scoped memory for tpu_custom_call.1']
    #allocation5 [shape = 'u8[65536]{0}', space=vmem, size = 0x10000, scoped, tag = 'output window, operand 0, single buffered']
    %9 = vsyncpa [#allocation3], 0
    %10 = vsyncpa [#allocation4], 0
    // Predicated region
    $region2: #{tpu_custom_call.1} parent=1 // pred_check
      _
    $region3: #{tpu_custom_call.1} parent=1 // pred_check_branch
      %12 = sbr.rel (0) target = $region5
    $region4: #{tpu_custom_call.1} parent=1 // pred_region
      %s14 = ssub.s32 2048, 2048
      %15 = vsyncadd [#allocation3], %s14
      %s16 = sshll.u32 [#allocation2], 4
      %s17 = int_to_ptr.vmem [resolvable:$true] %s16
      %22 = dma.hbm_to_vmem [thread:$0]  %s0, 2048, %s17, [#allocation3], 256, 256, 16
    $region5: #{tpu_custom_call.1} parent=1 // pred_fallthru
      _
    // Predicated region
    $region6: #{tpu_custom_call.1} parent=1 // pred_check
      _
    $region7: #{tpu_custom_call.1} parent=1 // pred_check_branch
      %24 = sbr.rel (0) target = $region9
    $region8: #{tpu_custom_call.1} parent=1 // pred_region
      _
    $region9: #{tpu_custom_call.1} parent=1 // pred_fallthru
      _
    // Predicated region
    $region10: #{tpu_custom_call.1} parent=1 // pred_check
      _
    $region11: #{tpu_custom_call.1} parent=1 // pred_check_branch
      %26 = sbr.rel (0) target = $region13
    $region12: #{tpu_custom_call.1} parent=1 // pred_region
      _
    $region13: #{tpu_custom_call.1} parent=1 // pred_fallthru
      _
    // Predicated region
    $region14: #{tpu_custom_call.1} parent=1 // pred_check
      _
    $region15: #{tpu_custom_call.1} parent=1 // pred_check_branch
      %28 = sbr.rel (0) target = $region17
    $region16: #{tpu_custom_call.1} parent=1 // pred_region
      _
    $region17: #{tpu_custom_call.1} parent=1 // pred_fallthru
      _
    // Predicated region
    $region18: #{tpu_custom_call.1} parent=1 // pred_check
      _
    $region19: #{tpu_custom_call.1} parent=1 // pred_check_branch
      %30 = sbr.rel (0) target = $region21
    $region20: #{tpu_custom_call.1} parent=1 // pred_region
      %31 = dma.done [#allocation3], 2048
    $region21: #{tpu_custom_call.1} parent=1 // pred_fallthru
      _
    %v32 = vld [vmem:[%s3] sm:$0x3f]
    %v33 = vld [vmem:[%s3 + $0x8] sm:$0x3f]
    %vm34 = vcmp.gt.f32.partialorder %v32, 0.5
    %vm35 = vcmp.gt.f32.partialorder %v33, 0.5
    %v36 = vld [vmem:[#allocation2] sm:$0xff]
    %v37 = vld [vmem:[#allocation2 + $0x8] sm:$0xff]
    %v38 = vld [vmem:[#allocation2 + $0x10] sm:$0xff]
    %v39 = vld [vmem:[#allocation2 + $0x18] sm:$0xff]
    %v40 = vld [vmem:[#allocation2 + $0x20] sm:$0xff]
    %v41 = vld [vmem:[#allocation2 + $0x28] sm:$0xff]
    %v42 = vld [vmem:[#allocation2 + $0x30] sm:$0xff]
    %v43 = vld [vmem:[#allocation2 + $0x38] sm:$0xff]
    %v44 = vld [vmem:[%s1] sm:$0xff]
    %vm45 = vcmask 261120
    %v47 = vsel %vm45, %v44, 0
    %49 = vmatprep.subr.mxu0 0.0
    %50 = vmatpush1.msra.mxu0 0.0
    %51 = vmatprep.subr.mxu0 0.0
    %52 = vmatpush1.msra.mxu0 0.0
    %53 = vmatprep.subr.mxu0 0.0
    %54 = vmatpush1.msra.mxu0 0.0
    %55 = vmatprep.subr.mxu0 0.0
    %56 = vmatpush1.msra.mxu0 0.0
    %57 = vmatprep.subr.mxu0 0.0
    %58 = vmatpush1.msra.mxu0 0.0
    %59 = vmatprep.subr.mxu0 0.0
    %60 = vmatpush1.msra.mxu0 0.0
    %61 = vmatprep.subr.mxu0 0.0
    %62 = vmatpush1.msra.mxu0 0.0
    %63 = vmatprep.subr.mxu0 0.0
    %64 = vmatpush1.msra.mxu0 0.0
    %65 = vmatprep.subr.mxu0 0.0
    %66 = vmatpush1.msra.mxu0 0.0
    %67 = vmatprep.subr.mxu0 0.0
    %68 = vmatpush1.msra.mxu0 0.0
    %69 = vmatprep.subr.mxu0 0.0
    %70 = vmatpush1.msra.mxu0 0.0
    %71 = vmatprep.subr.mxu0 0.0
    %72 = vmatpush1.msra.mxu0 0.0
    %73 = vmatprep.subr.mxu0 %v43
    %74 = vmatpush1.msra.mxu0 %v42
    %75 = vmatprep.subr.mxu0 %v41
    %76 = vmatpush1.msra.mxu0 %v40
    %77 = vmatprep.subr.mxu0 %v39
    %78 = vmatpush1.msra.mxu0 %v38
    %79 = vmatprep.subr.mxu0 %v37
    %80 = vmatpush1.msra.mxu0 %v36
    %81 = vmatprep.subr.mxu0 0.0
    %82 = vmatpush2.msra.mxu0 0.0
    %83 = vmatprep.subr.mxu0 0.0
    %84 = vmatpush2.msra.mxu0 0.0
    %85 = vmatprep.subr.mxu0 0.0
    %86 = vmatpush2.msra.mxu0 0.0
    %87 = vmatprep.subr.mxu0 0.0
    %88 = vmatpush2.msra.mxu0 0.0
    %89 = vmatprep.subr.mxu0 0.0
    %90 = vmatpush2.msra.mxu0 0.0
    %91 = vmatprep.subr.mxu0 0.0
    %92 = vmatpush2.msra.mxu0 0.0
    %93 = vmatprep.subr.mxu0 0.0
    %94 = vmatpush2.msra.mxu0 0.0
    %95 = vmatprep.subr.mxu0 0.0
    %96 = vmatpush2.msra.mxu0 0.0
    %97 = vmatprep.subr.mxu0 0.0
    %98 = vmatpush2.msra.mxu0 0.0
    %99 = vmatprep.subr.mxu0 0.0
    %100 = vmatpush2.msra.mxu0 0.0
    %101 = vmatprep.subr.mxu0 0.0
    %102 = vmatpush2.msra.mxu0 0.0
    %103 = vmatprep.subr.mxu0 0.0
    %104 = vmatpush2.msra.mxu0 0.0
    %105 = vmatprep.subr.mxu0 0.0
    %106 = vmatpush2.msra.mxu0 0.0
    %107 = vmatprep.subr.mxu0 0.0
    %108 = vmatpush2.msra.mxu0 0.0
    %109 = vmatprep.subr.mxu0 0.0
    %110 = vmatpush2.msra.mxu0 0.0
    %111 = vmatprep.subr.mxu0 0.0
    %112 = vmatpush2.msra.mxu0 0.0
    %113 = vmatprep.mubr.f32.mxu0 0.0
    %114 = vmatmul.mubr.f32.gmra.mxu0 %v47
    %v115 = vpop.f32.mrf.mxu0
    %v116 = vadd.f32 0.0, %v115
    %v117 = vpop.f32.mrf.mxu0
    %v118 = vadd.f32 0.0, %v117
    %119 = vdwg.mxu0
    %v120 = vmax.f32 %v116, 0.0
    %v121 = vmax.f32 %v118, 0.0
    %124 = vrot.lane.b32.xlu0 %v120, 127
    %v125 = vpop.permute.xlu0 %124
    %126 = vrot.lane.b32.xlu0 %v121, 127
    %v127 = vpop.permute.xlu0 %126
    %vm128 = vcmask 1039360
    %v129 = vsel %vm128, %v125, %v127
    %v133 = vsel %vm128, %v127, %v125
    %v134 = vmax.f32 %v120, %v129
    %v135 = vmax.f32 %v121, %v133
    %137 = vrot.lane.b32.xlu0 %v135, 1
    %v138 = vpop.permute.xlu0 %137
    %141 = vrot.lane.b32.xlu0 %v134, 1
    %v142 = vpop.permute.xlu0 %141
    %vm143 = vcmask 7168
    %v144 = vsel %vm143, %v142, %v138
    %v147 = vsel %vm143, %v138, %v142
    %v148 = vsel %vm34, 1, 0
    %v149 = vsel %vm35, 1, 0
    %v150 = vlaneseq
    %v151 = vshrl.u32 %v150, 7
    %v152 = vsub.s32 0, %v151
    %v153 = vrot.slane %v148, %v152
    %v154 = vlaneseq
    %v155 = vshrl.u32 %v154, 7
    %v156 = vsub.s32 0, %v155
    %v157 = vrot.slane %v149, %v156
    %vm158 = vcmp.eq.s32.totalorder %v153, 1
    %vm159 = vcmp.eq.s32.totalorder %v157, 1
    %v160 = vsel %vm158, %v134, %v147
    %v161 = vsel %vm159, %v135, %v144
    %164 = vrot.lane.b32.xlu0 %v160, 112
    %v165 = vpop.permute.xlu0 %164
    %166 = vrot.lane.b32.xlu0 %v161, 112
    %v167 = vpop.permute.xlu0 %166
    %vm168 = vcmask 916480
    %v169 = vsel %vm168, %v165, %v167
    %v173 = vsel %vm168, %v167, %v165
    %v174 = vmax.f32 %v160, %v169
    %v175 = vmax.f32 %v161, %v173
    %177 = vrot.lane.b32.xlu0 %v175, 16
    %v178 = vpop.permute.xlu0 %177
    %181 = vrot.lane.b32.xlu0 %v174, 16
    %v182 = vpop.permute.xlu0 %181
    %vm183 = vcmask 130048
    %v184 = vsel %vm183, %v182, %v178
    %v187 = vsel %vm183, %v178, %v182
    %v188 = vlaneseq
    %v189 = vshrl.u32 %v188, 7
    %v190 = vsub.s32 1, %v189
    %v191 = vrot.slane %v148, %v190
    %v192 = vlaneseq
    %v193 = vshrl.u32 %v192, 7
    %v194 = vsub.s32 1, %v193
    %v195 = vrot.slane %v149, %v194
    %vm196 = vcmp.eq.s32.totalorder %v191, 1
    %vm197 = vcmp.eq.s32.totalorder %v195, 1
    %v198 = vsel %vm196, %v174, %v187
    %v199 = vsel %vm197, %v175, %v184
    %v200 = vld [vmem:[%s2] sm:$0xff]
    %v201 = vld [vmem:[%s2 + $0x8] sm:$0xff]
    %v202 = vld [vmem:[%s2 + $0x10] sm:$0xff]
    %v203 = vld [vmem:[%s2 + $0x18] sm:$0xff]
    %vm204 = vcmask 64512
    %v206 = vsel %vm204, %v200, 0
    %v209 = vsel %vm204, %v201, 0
    %v212 = vsel %vm204, %v202, 0
    %v215 = vsel %vm204, %v203, 0
    %217 = vmatprep.subr.mxu0 0.0
    %218 = vmatpush1.msra.mxu0 0.0
    %219 = vmatprep.subr.mxu0 0.0
    %220 = vmatpush1.msra.mxu0 0.0
    %221 = vmatprep.subr.mxu0 0.0
    %222 = vmatpush1.msra.mxu0 0.0
    %223 = vmatprep.subr.mxu0 0.0
    %224 = vmatpush1.msra.mxu0 0.0
    %225 = vmatprep.subr.mxu0 0.0
    %226 = vmatpush1.msra.mxu0 0.0
    %227 = vmatprep.subr.mxu0 0.0
    %228 = vmatpush1.msra.mxu0 0.0
    %229 = vmatprep.subr.mxu0 0.0
    %230 = vmatpush1.msra.mxu0 0.0
    %231 = vmatprep.subr.mxu0 0.0
    %232 = vmatpush1.msra.mxu0 0.0
    %233 = vmatprep.subr.mxu0 0.0
    %234 = vmatpush1.msra.mxu0 0.0
    %235 = vmatprep.subr.mxu0 0.0
    %236 = vmatpush1.msra.mxu0 0.0
    %237 = vmatprep.subr.mxu0 0.0
    %238 = vmatpush1.msra.mxu0 0.0
    %239 = vmatprep.subr.mxu0 0.0
    %240 = vmatpush1.msra.mxu0 0.0
    %241 = vmatprep.subr.mxu0 0.0
    %242 = vmatpush1.msra.mxu0 0.0
    %243 = vmatprep.subr.mxu0 0.0
    %244 = vmatpush1.msra.mxu0 0.0
    %245 = vmatprep.subr.mxu0 0.0
    %246 = vmatpush1.msra.mxu0 0.0
    %247 = vmatprep.subr.mxu0 %v199
    %248 = vmatpush1.msra.mxu0 %v198
    %249 = vmatprep.subr.mxu0 0.0
    %250 = vmatpush2.msra.mxu0 0.0
    %251 = vmatprep.subr.mxu0 0.0
    %252 = vmatpush2.msra.mxu0 0.0
    %253 = vmatprep.subr.mxu0 0.0
    %254 = vmatpush2.msra.mxu0 0.0
    %255 = vmatprep.subr.mxu0 0.0
    %256 = vmatpush2.msra.mxu0 0.0
    %257 = vmatprep.subr.mxu0 0.0
    %258 = vmatpush2.msra.mxu0 0.0
    %259 = vmatprep.subr.mxu0 0.0
    %260 = vmatpush2.msra.mxu0 0.0
    %261 = vmatprep.subr.mxu0 0.0
    %262 = vmatpush2.msra.mxu0 0.0
    %263 = vmatprep.subr.mxu0 0.0
    %264 = vmatpush2.msra.mxu0 0.0
    %265 = vmatprep.subr.mxu0 0.0
    %266 = vmatpush2.msra.mxu0 0.0
    %267 = vmatprep.subr.mxu0 0.0
    %268 = vmatpush2.msra.mxu0 0.0
    %269 = vmatprep.subr.mxu0 0.0
    %270 = vmatpush2.msra.mxu0 0.0
    %271 = vmatprep.subr.mxu0 0.0
    %272 = vmatpush2.msra.mxu0 0.0
    %273 = vmatprep.subr.mxu0 0.0
    %274 = vmatpush2.msra.mxu0 0.0
    %275 = vmatprep.subr.mxu0 0.0
    %276 = vmatpush2.msra.mxu0 0.0
    %277 = vmatprep.subr.mxu0 0.0
    %278 = vmatpush2.msra.mxu0 0.0
    %279 = vmatprep.subr.mxu0 0.0
    %280 = vmatpush2.msra.mxu0 0.0
    %281 = vmatprep.mubr.f32.mxu0 0.0
    %282 = vmatmul.mubr.f32.gmra.mxu0 %v206
    %v283 = vpop.f32.mrf.mxu0
    %v284 = vadd.f32 0.0, %v283
    %v285 = vpop.f32.mrf.mxu0
    %v286 = vadd.f32 0.0, %v285
    %287 = vmatprep.mubr.f32.mxu0 0.0
    %288 = vmatmul.mubr.f32.gmra.mxu0 %v209
    %v289 = vpop.f32.mrf.mxu0
    %v290 = vadd.f32 0.0, %v289
    %v291 = vpop.f32.mrf.mxu0
    %v292 = vadd.f32 0.0, %v291
    %293 = vmatprep.mubr.f32.mxu0 0.0
    %294 = vmatmul.mubr.f32.gmra.mxu0 %v212
    %v295 = vpop.f32.mrf.mxu0
    %v296 = vadd.f32 0.0, %v295
    %v297 = vpop.f32.mrf.mxu0
    %v298 = vadd.f32 0.0, %v297
    %299 = vmatprep.mubr.f32.mxu0 0.0
    %300 = vmatmul.mubr.f32.gmra.mxu0 %v215
    %v301 = vpop.f32.mrf.mxu0
    %v302 = vadd.f32 0.0, %v301
    %v303 = vpop.f32.mrf.mxu0
    %v304 = vadd.f32 0.0, %v303
    %305 = vdwg.mxu0
    %v306 = vmax.f32 %v284, 0.0
    %v307 = vmax.f32 %v286, 0.0
    %v308 = vmax.f32 %v290, 0.0
    %v309 = vmax.f32 %v292, 0.0
    %v310 = vmax.f32 %v296, 0.0
    %v311 = vmax.f32 %v298, 0.0
    %v312 = vmax.f32 %v302, 0.0
    %v313 = vmax.f32 %v304, 0.0
    %318 = vrot.lane.b32.xlu0 %v307, 1
    %v319 = vpop.permute.xlu0 %318
    %320 = vrot.lane.b32.xlu0 %v309, 1
    %v321 = vpop.permute.xlu0 %320
    %322 = vrot.lane.b32.xlu0 %v311, 1
    %v323 = vpop.permute.xlu0 %322
    %324 = vrot.lane.b32.xlu0 %v313, 1
    %v325 = vpop.permute.xlu0 %324
    %334 = vrot.lane.b32.xlu0 %v306, 1
    %v335 = vpop.permute.xlu0 %334
    %336 = vrot.lane.b32.xlu0 %v308, 1
    %v337 = vpop.permute.xlu0 %336
    %338 = vrot.lane.b32.xlu0 %v310, 1
    %v339 = vpop.permute.xlu0 %338
    %340 = vrot.lane.b32.xlu0 %v312, 1
    %v341 = vpop.permute.xlu0 %340
    %v342 = vsel %vm143, %v335, %v319
    %v343 = vsel %vm143, %v337, %v321
    %v344 = vsel %vm143, %v339, %v323
    %v345 = vsel %vm143, %v341, %v325
    %v354 = vsel %vm143, %v319, %v335
    %v355 = vsel %vm143, %v321, %v337
    %v356 = vsel %vm143, %v323, %v339
    %v357 = vsel %vm143, %v325, %v341
    %358 = vrot.lane.b32.xlu0 %v306, 127
    %v359 = vpop.permute.xlu0 %358
    %360 = vrot.lane.b32.xlu0 %v307, 127
    %v361 = vpop.permute.xlu0 %360
    %362 = vrot.lane.b32.xlu0 %v308, 127
    %v363 = vpop.permute.xlu0 %362
    %364 = vrot.lane.b32.xlu0 %v309, 127
    %v365 = vpop.permute.xlu0 %364
    %366 = vrot.lane.b32.xlu0 %v310, 127
    %v367 = vpop.permute.xlu0 %366
    %368 = vrot.lane.b32.xlu0 %v311, 127
    %v369 = vpop.permute.xlu0 %368
    %370 = vrot.lane.b32.xlu0 %v312, 127
    %v371 = vpop.permute.xlu0 %370
    %372 = vrot.lane.b32.xlu0 %v313, 127
    %v373 = vpop.permute.xlu0 %372
    %v374 = vsel %vm128, %v359, %v361
    %v375 = vsel %vm128, %v363, %v365
    %v376 = vsel %vm128, %v367, %v369
    %v377 = vsel %vm128, %v371, %v373
    %v390 = vsel %vm128, %v361, %v359
    %v391 = vsel %vm128, %v365, %v363
    %v392 = vsel %vm128, %v369, %v367
    %v393 = vsel %vm128, %v373, %v371
    %v394 = vsel %vm158, %v354, %v374
    %v395 = vsel %vm159, %v342, %v390
    %v396 = vsel %vm158, %v355, %v375
    %v397 = vsel %vm159, %v343, %v391
    %v398 = vsel %vm158, %v356, %v376
    %v399 = vsel %vm159, %v344, %v392
    %v400 = vsel %vm158, %v357, %v377
    %v401 = vsel %vm159, %v345, %v393
    %v402 = vlaneseq
    %v403 = vshrl.u32 %v402, 7
    %v404 = vsub.s32 2, %v403
    %v405 = vrot.slane %v32, %v404
    %v406 = vlaneseq
    %v407 = vshrl.u32 %v406, 7
    %v408 = vsub.s32 2, %v407
    %v409 = vrot.slane %v33, %v408
    %v410 = vmul.f32 %v405, %v306
    %v411 = vmul.f32 %v409, %v307
    %v412 = vmul.f32 %v405, %v308
    %v413 = vmul.f32 %v409, %v309
    %v414 = vmul.f32 %v405, %v310
    %v415 = vmul.f32 %v409, %v311
    %v416 = vmul.f32 %v405, %v312
    %v417 = vmul.f32 %v409, %v313
    %v418 = vlaneseq
    %v419 = vshrl.u32 %v418, 7
    %v420 = vsub.s32 3, %v419
    %v421 = vrot.slane %v32, %v420
    %v422 = vlaneseq
    %v423 = vshrl.u32 %v422, 7
    %v424 = vsub.s32 3, %v423
    %v425 = vrot.slane %v33, %v424
    %v426 = vmul.f32 %v421, %v394
    %v427 = vmul.f32 %v425, %v395
    %v428 = vmul.f32 %v421, %v396
    %v429 = vmul.f32 %v425, %v397
    %v430 = vmul.f32 %v421, %v398
    %v431 = vmul.f32 %v425, %v399
    %v432 = vmul.f32 %v421, %v400
    %v433 = vmul.f32 %v425, %v401
    %v434 = vadd.f32 %v410, %v426
    %v435 = vadd.f32 %v411, %v427
    %v436 = vadd.f32 %v412, %v428
    %v437 = vadd.f32 %v413, %v429
    %v438 = vadd.f32 %v414, %v430
    %v439 = vadd.f32 %v415, %v431
    %v440 = vadd.f32 %v416, %v432
    %v441 = vadd.f32 %v417, %v433
    %446 = vrot.lane.b32.xlu0 %v435, 16
    %v447 = vpop.permute.xlu0 %446
    %448 = vrot.lane.b32.xlu0 %v437, 16
    %v449 = vpop.permute.xlu0 %448
    %450 = vrot.lane.b32.xlu0 %v439, 16
    %v451 = vpop.permute.xlu0 %450
    %452 = vrot.lane.b32.xlu0 %v441, 16
    %v453 = vpop.permute.xlu0 %452
    %462 = vrot.lane.b32.xlu0 %v434, 16
    %v463 = vpop.permute.xlu0 %462
    %464 = vrot.lane.b32.xlu0 %v436, 16
    %v465 = vpop.permute.xlu0 %464
    %466 = vrot.lane.b32.xlu0 %v438, 16
    %v467 = vpop.permute.xlu0 %466
    %468 = vrot.lane.b32.xlu0 %v440, 16
    %v469 = vpop.permute.xlu0 %468
    %v470 = vsel %vm183, %v463, %v447
    %v471 = vsel %vm183, %v465, %v449
    %v472 = vsel %vm183, %v467, %v451
    %v473 = vsel %vm183, %v469, %v453
    %v482 = vsel %vm183, %v447, %v463
    %v483 = vsel %vm183, %v449, %v465
    %v484 = vsel %vm183, %v451, %v467
    %v485 = vsel %vm183, %v453, %v469
    %486 = vrot.lane.b32.xlu0 %v434, 112
    %v487 = vpop.permute.xlu0 %486
    %488 = vrot.lane.b32.xlu0 %v435, 112
    %v489 = vpop.permute.xlu0 %488
    %490 = vrot.lane.b32.xlu0 %v436, 112
    %v491 = vpop.permute.xlu0 %490
    %492 = vrot.lane.b32.xlu0 %v437, 112
    %v493 = vpop.permute.xlu0 %492
    %494 = vrot.lane.b32.xlu0 %v438, 112
    %v495 = vpop.permute.xlu0 %494
    %496 = vrot.lane.b32.xlu0 %v439, 112
    %v497 = vpop.permute.xlu0 %496
    %498 = vrot.lane.b32.xlu0 %v440, 112
    %v499 = vpop.permute.xlu0 %498
    %500 = vrot.lane.b32.xlu0 %v441, 112
    %v501 = vpop.permute.xlu0 %500
    %v502 = vsel %vm168, %v487, %v489
    %v503 = vsel %vm168, %v491, %v493
    %v504 = vsel %vm168, %v495, %v497
    %v505 = vsel %vm168, %v499, %v501
    %v518 = vsel %vm168, %v489, %v487
    %v519 = vsel %vm168, %v493, %v491
    %v520 = vsel %vm168, %v497, %v495
    %v521 = vsel %vm168, %v501, %v499
    %v522 = vsel %vm196, %v482, %v502
    %v523 = vsel %vm197, %v470, %v518
    %v524 = vsel %vm196, %v483, %v503
    %v525 = vsel %vm197, %v471, %v519
    %v526 = vsel %vm196, %v484, %v504
    %v527 = vsel %vm197, %v472, %v520
    %v528 = vsel %vm196, %v485, %v505
    %v529 = vsel %vm197, %v473, %v521
    %v530 = vlaneseq
    %v531 = vshrl.u32 %v530, 7
    %v532 = vsub.s32 4, %v531
    %v533 = vrot.slane %v32, %v532
    %v534 = vlaneseq
    %v535 = vshrl.u32 %v534, 7
    %v536 = vsub.s32 4, %v535
    %v537 = vrot.slane %v33, %v536
    %v538 = vmul.f32 %v533, %v434
    %v539 = vmul.f32 %v537, %v435
    %v540 = vmul.f32 %v533, %v436
    %v541 = vmul.f32 %v537, %v437
    %v542 = vmul.f32 %v533, %v438
    %v543 = vmul.f32 %v537, %v439
    %v544 = vmul.f32 %v533, %v440
    %v545 = vmul.f32 %v537, %v441
    %v546 = vlaneseq
    %v547 = vshrl.u32 %v546, 7
    %v548 = vsub.s32 5, %v547
    %v549 = vrot.slane %v32, %v548
    %v550 = vlaneseq
    %v551 = vshrl.u32 %v550, 7
    %v552 = vsub.s32 5, %v551
    %v553 = vrot.slane %v33, %v552
    %v554 = vmul.f32 %v549, %v522
    %v555 = vmul.f32 %v553, %v523
    %v556 = vmul.f32 %v549, %v524
    %v557 = vmul.f32 %v553, %v525
    %v558 = vmul.f32 %v549, %v526
    %v559 = vmul.f32 %v553, %v527
    %v560 = vmul.f32 %v549, %v528
    %v561 = vmul.f32 %v553, %v529
    %v562 = vadd.f32 %v538, %v554
    %v563 = vadd.f32 %v539, %v555
    %v564 = vadd.f32 %v540, %v556
    %v565 = vadd.f32 %v541, %v557
    %v566 = vadd.f32 %v542, %v558
    %v567 = vadd.f32 %v543, %v559
    %v568 = vadd.f32 %v544, %v560
    %v569 = vadd.f32 %v545, %v561
    %v570 = vxor.u32 %v562, 2147483648
    %v571 = vxor.u32 %v563, 2147483648
    %v572 = vxor.u32 %v564, 2147483648
    %v573 = vxor.u32 %v565, 2147483648
    %v574 = vxor.u32 %v566, 2147483648
    %v575 = vxor.u32 %v567, 2147483648
    %v576 = vxor.u32 %v568, 2147483648
    %v577 = vxor.u32 %v569, 2147483648
    %v578 = vmul.f32 %v570, 1.442695
    %v579 = vpow.pop %v578
    %v580 = vmul.f32 %v571, 1.442695
    %v581 = vpow.pop %v580
    %v582 = vmul.f32 %v572, 1.442695
    %v583 = vpow.pop %v582
    %v584 = vmul.f32 %v573, 1.442695
    %v585 = vpow.pop %v584
    %v586 = vmul.f32 %v574, 1.442695
    %v587 = vpow.pop %v586
    %v588 = vmul.f32 %v575, 1.442695
    %v589 = vpow.pop %v588
    %v590 = vmul.f32 %v576, 1.442695
    %v591 = vpow.pop %v590
    %v592 = vmul.f32 %v577, 1.442695
    %v593 = vpow.pop %v592
    %v594 = vadd.f32 %v579, 1.0
    %v595 = vadd.f32 %v581, 1.0
    %v596 = vadd.f32 %v583, 1.0
    %v597 = vadd.f32 %v585, 1.0
    %v598 = vadd.f32 %v587, 1.0
    %v599 = vadd.f32 %v589, 1.0
    %v600 = vadd.f32 %v591, 1.0
    %v601 = vadd.f32 %v593, 1.0
    %v602 = vrcp.pop %v594
    %v603 = vmul.f32 1.0, %v602
    %v604 = vrcp.pop %v595
    %v605 = vmul.f32 1.0, %v604
    %v606 = vrcp.pop %v596
    %v607 = vmul.f32 1.0, %v606
    %v608 = vrcp.pop %v597
    %v609 = vmul.f32 1.0, %v608
    %v610 = vrcp.pop %v598
    %v611 = vmul.f32 1.0, %v610
    %v612 = vrcp.pop %v599
    %v613 = vmul.f32 1.0, %v612
    %v614 = vrcp.pop %v600
    %v615 = vmul.f32 1.0, %v614
    %v616 = vrcp.pop %v601
    %v617 = vmul.f32 1.0, %v616
    %v618 = vmul.f32 %v36, %v603
    %v619 = vmul.f32 %v37, %v605
    %v620 = vmul.f32 %v38, %v607
    %v621 = vmul.f32 %v39, %v609
    %v622 = vmul.f32 %v40, %v611
    %v623 = vmul.f32 %v41, %v613
    %v624 = vmul.f32 %v42, %v615
    %v625 = vmul.f32 %v43, %v617
    %626 = vst [vmem:[#allocation5] sm:$0xff] %v618
    %627 = vst [vmem:[#allocation5 + $0x8] sm:$0xff] %v619
    %628 = vst [vmem:[#allocation5 + $0x10] sm:$0xff] %v620
    %629 = vst [vmem:[#allocation5 + $0x18] sm:$0xff] %v621
    %630 = vst [vmem:[#allocation5 + $0x20] sm:$0xff] %v622
    %631 = vst [vmem:[#allocation5 + $0x28] sm:$0xff] %v623
    %632 = vst [vmem:[#allocation5 + $0x30] sm:$0xff] %v624
    %633 = vst [vmem:[#allocation5 + $0x38] sm:$0xff] %v625
    %s634 = scalar_lea.vmem [#allocation2], 64
    %v635 = vld [vmem:[%s634] sm:$0xff]
    %v636 = vld [vmem:[%s634 + $0x8] sm:$0xff]
    %v637 = vld [vmem:[%s634 + $0x10] sm:$0xff]
    %v638 = vld [vmem:[%s634 + $0x18] sm:$0xff]
    %v639 = vld [vmem:[%s634 + $0x20] sm:$0xff]
    %v640 = vld [vmem:[%s634 + $0x28] sm:$0xff]
    %v641 = vld [vmem:[%s634 + $0x30] sm:$0xff]
    %v642 = vld [vmem:[%s634 + $0x38] sm:$0xff]
    %v643 = vld [vmem:[%s1] sm:$0xff]
    %v645 = vsel %vm45, %v643, 0
    %647 = vmatprep.subr.mxu0 0.0
    %648 = vmatpush1.msra.mxu0 0.0
    %649 = vmatprep.subr.mxu0 0.0
    %650 = vmatpush1.msra.mxu0 0.0
    %651 = vmatprep.subr.mxu0 0.0
    %652 = vmatpush1.msra.mxu0 0.0
    %653 = vmatprep.subr.mxu0 0.0
    %654 = vmatpush1.msra.mxu0 0.0
    %655 = vmatprep.subr.mxu0 0.0
    %656 = vmatpush1.msra.mxu0 0.0
    %657 = vmatprep.subr.mxu0 0.0
    %658 = vmatpush1.msra.mxu0 0.0
    %659 = vmatprep.subr.mxu0 0.0
    %660 = vmatpush1.msra.mxu0 0.0
    %661 = vmatprep.subr.mxu0 0.0
    %662 = vmatpush1.msra.mxu0 0.0
    %663 = vmatprep.subr.mxu0 0.0
    %664 = vmatpush1.msra.mxu0 0.0
    %665 = vmatprep.subr.mxu0 0.0
    %666 = vmatpush1.msra.mxu0 0.0
    %667 = vmatprep.subr.mxu0 0.0
    %668 = vmatpush1.msra.mxu0 0.0
    %669 = vmatprep.subr.mxu0 0.0
    %670 = vmatpush1.msra.mxu0 0.0
    %671 = vmatprep.subr.mxu0 %v642
    %672 = vmatpush1.msra.mxu0 %v641
    %673 = vmatprep.subr.mxu0 %v640
    %674 = vmatpush1.msra.mxu0 %v639
    %675 = vmatprep.subr.mxu0 %v638
    %676 = vmatpush1.msra.mxu0 %v637
    %677 = vmatprep.subr.mxu0 %v636
    %678 = vmatpush1.msra.mxu0 %v635
    %679 = vmatprep.subr.mxu0 0.0
    %680 = vmatpush2.msra.mxu0 0.0
    %681 = vmatprep.subr.mxu0 0.0
    %682 = vmatpush2.msra.mxu0 0.0
    %683 = vmatprep.subr.mxu0 0.0
    %684 = vmatpush2.msra.mxu0 0.0
    %685 = vmatprep.subr.mxu0 0.0
    %686 = vmatpush2.msra.mxu0 0.0
    %687 = vmatprep.subr.mxu0 0.0
    %688 = vmatpush2.msra.mxu0 0.0
    %689 = vmatprep.subr.mxu0 0.0
    %690 = vmatpush2.msra.mxu0 0.0
    %691 = vmatprep.subr.mxu0 0.0
    %692 = vmatpush2.msra.mxu0 0.0
    %693 = vmatprep.subr.mxu0 0.0
    %694 = vmatpush2.msra.mxu0 0.0
    %695 = vmatprep.subr.mxu0 0.0
    %696 = vmatpush2.msra.mxu0 0.0
    %697 = vmatprep.subr.mxu0 0.0
    %698 = vmatpush2.msra.mxu0 0.0
    %699 = vmatprep.subr.mxu0 0.0
    %700 = vmatpush2.msra.mxu0 0.0
    %701 = vmatprep.subr.mxu0 0.0
    %702 = vmatpush2.msra.mxu0 0.0
    %703 = vmatprep.subr.mxu0 0.0
    %704 = vmatpush2.msra.mxu0 0.0
    %705 = vmatprep.subr.mxu0 0.0
    %706 = vmatpush2.msra.mxu0 0.0
    %707 = vmatprep.subr.mxu0 0.0
    %708 = vmatpush2.msra.mxu0 0.0
    %709 = vmatprep.subr.mxu0 0.0
    %710 = vmatpush2.msra.mxu0 0.0
    %711 = vmatprep.mubr.f32.mxu0 0.0
    %712 = vmatmul.mubr.f32.gmra.mxu0 %v645
    %v713 = vpop.f32.mrf.mxu0
    %v714 = vadd.f32 0.0, %v713
    %v715 = vpop.f32.mrf.mxu0
    %v716 = vadd.f32 0.0, %v715
    %717 = vdwg.mxu0
    %v718 = vmax.f32 %v714, 0.0
    %v719 = vmax.f32 %v716, 0.0
    %722 = vrot.lane.b32.xlu0 %v718, 127
    %v723 = vpop.permute.xlu0 %722
    %724 = vrot.lane.b32.xlu0 %v719, 127
    %v725 = vpop.permute.xlu0 %724
    %v726 = vsel %vm128, %v723, %v725
    %v730 = vsel %vm128, %v725, %v723
    %v731 = vmax.f32 %v718, %v726
    %v732 = vmax.f32 %v719, %v730
    %734 = vrot.lane.b32.xlu0 %v732, 1
    %v735 = vpop.permute.xlu0 %734
    %738 = vrot.lane.b32.xlu0 %v731, 1
    %v739 = vpop.permute.xlu0 %738
    %v740 = vsel %vm143, %v739, %v735
    %v743 = vsel %vm143, %v735, %v739
    %v744 = vsel %vm158, %v731, %v743
    %v745 = vsel %vm159, %v732, %v740
    %748 = vrot.lane.b32.xlu0 %v744, 112
    %v749 = vpop.permute.xlu0 %748
    %750 = vrot.lane.b32.xlu0 %v745, 112
    %v751 = vpop.permute.xlu0 %750
    %v752 = vsel %vm168, %v749, %v751
    %v756 = vsel %vm168, %v751, %v749
    %v757 = vmax.f32 %v744, %v752
    %v758 = vmax.f32 %v745, %v756
    %760 = vrot.lane.b32.xlu0 %v758, 16
    %v761 = vpop.permute.xlu0 %760
    %764 = vrot.lane.b32.xlu0 %v757, 16
    %v765 = vpop.permute.xlu0 %764
    %v766 = vsel %vm183, %v765, %v761
    %v769 = vsel %vm183, %v761, %v765
    %v770 = vsel %vm196, %v757, %v769
    %v771 = vsel %vm197, %v758, %v766
    %v772 = vld [vmem:[%s2] sm:$0xff]
    %v773 = vld [vmem:[%s2 + $0x8] sm:$0xff]
    %v774 = vld [vmem:[%s2 + $0x10] sm:$0xff]
    %v775 = vld [vmem:[%s2 + $0x18] sm:$0xff]
    %v777 = vsel %vm204, %v772, 0
    %v780 = vsel %vm204, %v773, 0
    %v783 = vsel %vm204, %v774, 0
    %v786 = vsel %vm204, %v775, 0
    %788 = vmatprep.subr.mxu0 0.0
    %789 = vmatpush1.msra.mxu0 0.0
    %790 = vmatprep.subr.mxu0 0.0
    %791 = vmatpush1.msra.mxu0 0.0
    %792 = vmatprep.subr.mxu0 0.0
    %793 = vmatpush1.msra.mxu0 0.0
    %794 = vmatprep.subr.mxu0 0.0
    %795 = vmatpush1.msra.mxu0 0.0
    %796 = vmatprep.subr.mxu0 0.0
    %797 = vmatpush1.msra.mxu0 0.0
    %798 = vmatprep.subr.mxu0 0.0
    %799 = vmatpush1.msra.mxu0 0.0
    %800 = vmatprep.subr.mxu0 0.0
    %801 = vmatpush1.msra.mxu0 0.0
    %802 = vmatprep.subr.mxu0 0.0
    %803 = vmatpush1.msra.mxu0 0.0
    %804 = vmatprep.subr.mxu0 0.0
    %805 = vmatpush1.msra.mxu0 0.0
    %806 = vmatprep.subr.mxu0 0.0
    %807 = vmatpush1.msra.mxu0 0.0
    %808 = vmatprep.subr.mxu0 0.0
    %809 = vmatpush1.msra.mxu0 0.0
    %810 = vmatprep.subr.mxu0 0.0
    %811 = vmatpush1.msra.mxu0 0.0
    %812 = vmatprep.subr.mxu0 0.0
    %813 = vmatpush1.msra.mxu0 0.0
    %814 = vmatprep.subr.mxu0 0.0
    %815 = vmatpush1.msra.mxu0 0.0
    %816 = vmatprep.subr.mxu0 0.0
    %817 = vmatpush1.msra.mxu0 0.0
    %818 = vmatprep.subr.mxu0 %v771
    %819 = vmatpush1.msra.mxu0 %v770
    %820 = vmatprep.subr.mxu0 0.0
    %821 = vmatpush2.msra.mxu0 0.0
    %822 = vmatprep.subr.mxu0 0.0
    %823 = vmatpush2.msra.mxu0 0.0
    %824 = vmatprep.subr.mxu0 0.0
    %825 = vmatpush2.msra.mxu0 0.0
    %826 = vmatprep.subr.mxu0 0.0
    %827 = vmatpush2.msra.mxu0 0.0
    %828 = vmatprep.subr.mxu0 0.0
    %829 = vmatpush2.msra.mxu0 0.0
    %830 = vmatprep.subr.mxu0 0.0
    %831 = vmatpush2.msra.mxu0 0.0
    %832 = vmatprep.subr.mxu0 0.0
    %833 = vmatpush2.msra.mxu0 0.0
    %834 = vmatprep.subr.mxu0 0.0
    %835 = vmatpush2.msra.mxu0 0.0
    %836 = vmatprep.subr.mxu0 0.0
    %837 = vmatpush2.msra.mxu0 0.0
    %838 = vmatprep.subr.mxu0 0.0
    %839 = vmatpush2.msra.mxu0 0.0
    %840 = vmatprep.subr.mxu0 0.0
    %841 = vmatpush2.msra.mxu0 0.0
    %842 = vmatprep.subr.mxu0 0.0
    %843 = vmatpush2.msra.mxu0 0.0
    %844 = vmatprep.subr.mxu0 0.0
    %845 = vmatpush2.msra.mxu0 0.0
    %846 = vmatprep.subr.mxu0 0.0
    %847 = vmatpush2.msra.mxu0 0.0
    %848 = vmatprep.subr.mxu0 0.0
    %849 = vmatpush2.msra.mxu0 0.0
    %850 = vmatprep.subr.mxu0 0.0
    %851 = vmatpush2.msra.mxu0 0.0
    %852 = vmatprep.mubr.f32.mxu0 0.0
    %853 = vmatmul.mubr.f32.gmra.mxu0 %v777
    %v854 = vpop.f32.mrf.mxu0
    %v855 = vadd.f32 0.0, %v854
    %v856 = vpop.f32.mrf.mxu0
    %v857 = vadd.f32 0.0, %v856
    %858 = vmatprep.mubr.f32.mxu0 0.0
    %859 = vmatmul.mubr.f32.gmra.mxu0 %v780
    %v860 = vpop.f32.mrf.mxu0
    %v861 = vadd.f32 0.0, %v860
    %v862 = vpop.f32.mrf.mxu0
    %v863 = vadd.f32 0.0, %v862
    %864 = vmatprep.mubr.f32.mxu0 0.0
    %865 = vmatmul.mubr.f32.gmra.mxu0 %v783
    %v866 = vpop.f32.mrf.mxu0
    %v867 = vadd.f32 0.0, %v866
    %v868 = vpop.f32.mrf.mxu0
    %v869 = vadd.f32 0.0, %v868
    %870 = vmatprep.mubr.f32.mxu0 0.0
    %871 = vmatmul.mubr.f32.gmra.mxu0 %v786
    %v872 = vpop.f32.mrf.mxu0
    %v873 = vadd.f32 0.0, %v872
    %v874 = vpop.f32.mrf.mxu0
    %v875 = vadd.f32 0.0, %v874
    %876 = vdwg.mxu0
    %v877 = vmax.f32 %v855, 0.0
    %v878 = vmax.f32 %v857, 0.0
    %v879 = vmax.f32 %v861, 0.0
    %v880 = vmax.f32 %v863, 0.0
    %v881 = vmax.f32 %v867, 0.0
    %v882 = vmax.f32 %v869, 0.0
    %v883 = vmax.f32 %v873, 0.0
    %v884 = vmax.f32 %v875, 0.0
    %889 = vrot.lane.b32.xlu0 %v878, 1
    %v890 = vpop.permute.xlu0 %889
    %891 = vrot.lane.b32.xlu0 %v880, 1
    %v892 = vpop.permute.xlu0 %891
    %893 = vrot.lane.b32.xlu0 %v882, 1
    %v894 = vpop.permute.xlu0 %893
    %895 = vrot.lane.b32.xlu0 %v884, 1
    %v896 = vpop.permute.xlu0 %895
    %905 = vrot.lane.b32.xlu0 %v877, 1
    %v906 = vpop.permute.xlu0 %905
    %907 = vrot.lane.b32.xlu0 %v879, 1
    %v908 = vpop.permute.xlu0 %907
    %909 = vrot.lane.b32.xlu0 %v881, 1
    %v910 = vpop.permute.xlu0 %909
    %911 = vrot.lane.b32.xlu0 %v883, 1
    %v912 = vpop.permute.xlu0 %911
    %v913 = vsel %vm143, %v906, %v890
    %v914 = vsel %vm143, %v908, %v892
    %v915 = vsel %vm143, %v910, %v894
    %v916 = vsel %vm143, %v912, %v896
    %v925 = vsel %vm143, %v890, %v906
    %v926 = vsel %vm143, %v892, %v908
    %v927 = vsel %vm143, %v894, %v910
    %v928 = vsel %vm143, %v896, %v912
    %929 = vrot.lane.b32.xlu0 %v877, 127
    %v930 = vpop.permute.xlu0 %929
    %931 = vrot.lane.b32.xlu0 %v878, 127
    %v932 = vpop.permute.xlu0 %931
    %933 = vrot.lane.b32.xlu0 %v879, 127
    %v934 = vpop.permute.xlu0 %933
    %935 = vrot.lane.b32.xlu0 %v880, 127
    %v936 = vpop.permute.xlu0 %935
    %937 = vrot.lane.b32.xlu0 %v881, 127
    %v938 = vpop.permute.xlu0 %937
    %939 = vrot.lane.b32.xlu0 %v882, 127
    %v940 = vpop.permute.xlu0 %939
    %941 = vrot.lane.b32.xlu0 %v883, 127
    %v942 = vpop.permute.xlu0 %941
    %943 = vrot.lane.b32.xlu0 %v884, 127
    %v944 = vpop.permute.xlu0 %943
    %v945 = vsel %vm128, %v930, %v932
    %v946 = vsel %vm128, %v934, %v936
    %v947 = vsel %vm128, %v938, %v940
    %v948 = vsel %vm128, %v942, %v944
    %v961 = vsel %vm128, %v932, %v930
    %v962 = vsel %vm128, %v936, %v934
    %v963 = vsel %vm128, %v940, %v938
    %v964 = vsel %vm128, %v944, %v942
    %v965 = vsel %vm158, %v925, %v945
    %v966 = vsel %vm159, %v913, %v961
    %v967 = vsel %vm158, %v926, %v946
    %v968 = vsel %vm159, %v914, %v962
    %v969 = vsel %vm158, %v927, %v947
    %v970 = vsel %vm159, %v915, %v963
    %v971 = vsel %vm158, %v928, %v948
    %v972 = vsel %vm159, %v916, %v964
    %v973 = vmul.f32 %v405, %v877
    %v974 = vmul.f32 %v409, %v878
    %v975 = vmul.f32 %v405, %v879
    %v976 = vmul.f32 %v409, %v880
    %v977 = vmul.f32 %v405, %v881
    %v978 = vmul.f32 %v409, %v882
    %v979 = vmul.f32 %v405, %v883
    %v980 = vmul.f32 %v409, %v884
    %v981 = vmul.f32 %v421, %v965
    %v982 = vmul.f32 %v425, %v966
    %v983 = vmul.f32 %v421, %v967
    %v984 = vmul.f32 %v425, %v968
    %v985 = vmul.f32 %v421, %v969
    %v986 = vmul.f32 %v425, %v970
    %v987 = vmul.f32 %v421, %v971
    %v988 = vmul.f32 %v425, %v972
    %v989 = vadd.f32 %v973, %v981
    %v990 = vadd.f32 %v974, %v982
    %v991 = vadd.f32 %v975, %v983
    %v992 = vadd.f32 %v976, %v984
    %v993 = vadd.f32 %v977, %v985
    %v994 = vadd.f32 %v978, %v986
    %v995 = vadd.f32 %v979, %v987
    %v996 = vadd.f32 %v980, %v988
    %1001 = vrot.lane.b32.xlu0 %v990, 16
    %v1002 = vpop.permute.xlu0 %1001
    %1003 = vrot.lane.b32.xlu0 %v992, 16
    %v1004 = vpop.permute.xlu0 %1003
    %1005 = vrot.lane.b32.xlu0 %v994, 16
    %v1006 = vpop.permute.xlu0 %1005
    %1007 = vrot.lane.b32.xlu0 %v996, 16
    %v1008 = vpop.permute.xlu0 %1007
    %1017 = vrot.lane.b32.xlu0 %v989, 16
    %v1018 = vpop.permute.xlu0 %1017
    %1019 = vrot.lane.b32.xlu0 %v991, 16
    %v1020 = vpop.permute.xlu0 %1019
    %1021 = vrot.lane.b32.xlu0 %v993, 16
    %v1022 = vpop.permute.xlu0 %1021
    %1023 = vrot.lane.b32.xlu0 %v995, 16
    %v1024 = vpop.permute.xlu0 %1023
    %v1025 = vsel %vm183, %v1018, %v1002
    %v1026 = vsel %vm183, %v1020, %v1004
    %v1027 = vsel %vm183, %v1022, %v1006
    %v1028 = vsel %vm183, %v1024, %v1008
    %v1037 = vsel %vm183, %v1002, %v1018
    %v1038 = vsel %vm183, %v1004, %v1020
    %v1039 = vsel %vm183, %v1006, %v1022
    %v1040 = vsel %vm183, %v1008, %v1024
    %1041 = vrot.lane.b32.xlu0 %v989, 112
    %v1042 = vpop.permute.xlu0 %1041
    %1043 = vrot.lane.b32.xlu0 %v990, 112
    %v1044 = vpop.permute.xlu0 %1043
    %1045 = vrot.lane.b32.xlu0 %v991, 112
    %v1046 = vpop.permute.xlu0 %1045
    %1047 = vrot.lane.b32.xlu0 %v992, 112
    %v1048 = vpop.permute.xlu0 %1047
    %1049 = vrot.lane.b32.xlu0 %v993, 112
    %v1050 = vpop.permute.xlu0 %1049
    %1051 = vrot.lane.b32.xlu0 %v994, 112
    %v1052 = vpop.permute.xlu0 %1051
    %1053 = vrot.lane.b32.xlu0 %v995, 112
    %v1054 = vpop.permute.xlu0 %1053
    %1055 = vrot.lane.b32.xlu0 %v996, 112
    %v1056 = vpop.permute.xlu0 %1055
    %v1057 = vsel %vm168, %v1042, %v1044
    %v1058 = vsel %vm168, %v1046, %v1048
    %v1059 = vsel %vm168, %v1050, %v1052
    %v1060 = vsel %vm168, %v1054, %v1056
    %v1073 = vsel %vm168, %v1044, %v1042
    %v1074 = vsel %vm168, %v1048, %v1046
    %v1075 = vsel %vm168, %v1052, %v1050
    %v1076 = vsel %vm168, %v1056, %v1054
    %v1077 = vsel %vm196, %v1037, %v1057
    %v1078 = vsel %vm197, %v1025, %v1073
    %v1079 = vsel %vm196, %v1038, %v1058
    %v1080 = vsel %vm197, %v1026, %v1074
    %v1081 = vsel %vm196, %v1039, %v1059
    %v1082 = vsel %vm197, %v1027, %v1075
    %v1083 = vsel %vm196, %v1040, %v1060
    %v1084 = vsel %vm197, %v1028, %v1076
    %v1085 = vmul.f32 %v533, %v989
    %v1086 = vmul.f32 %v537, %v990
    %v1087 = vmul.f32 %v533, %v991
    %v1088 = vmul.f32 %v537, %v992
    %v1089 = vmul.f32 %v533, %v993
    %v1090 = vmul.f32 %v537, %v994
    %v1091 = vmul.f32 %v533, %v995
    %v1092 = vmul.f32 %v537, %v996
    %v1093 = vmul.f32 %v549, %v1077
    %v1094 = vmul.f32 %v553, %v1078
    %v1095 = vmul.f32 %v549, %v1079
    %v1096 = vmul.f32 %v553, %v1080
    %v1097 = vmul.f32 %v549, %v1081
    %v1098 = vmul.f32 %v553, %v1082
    %v1099 = vmul.f32 %v549, %v1083
    %v1100 = vmul.f32 %v553, %v1084
    %v1101 = vadd.f32 %v1085, %v1093
    %v1102 = vadd.f32 %v1086, %v1094
    %v1103 = vadd.f32 %v1087, %v1095
    %v1104 = vadd.f32 %v1088, %v1096
    %v1105 = vadd.f32 %v1089, %v1097
    %v1106 = vadd.f32 %v1090, %v1098
    %v1107 = vadd.f32 %v1091, %v1099
    %v1108 = vadd.f32 %v1092, %v1100
    %v1109 = vxor.u32 %v1101, 2147483648
    %v1110 = vxor.u32 %v1102, 2147483648
    %v1111 = vxor.u32 %v1103, 2147483648
    %v1112 = vxor.u32 %v1104, 2147483648
    %v1113 = vxor.u32 %v1105, 2147483648
    %v1114 = vxor.u32 %v1106, 2147483648
    %v1115 = vxor.u32 %v1107, 2147483648
    %v1116 = vxor.u32 %v1108, 2147483648
    %v1117 = vmul.f32 %v1109, 1.442695
    %v1118 = vpow.pop %v1117
    %v1119 = vmul.f32 %v1110, 1.442695
    %v1120 = vpow.pop %v1119
    %v1121 = vmul.f32 %v1111, 1.442695
    %v1122 = vpow.pop %v1121
    %v1123 = vmul.f32 %v1112, 1.442695
    %v1124 = vpow.pop %v1123
    %v1125 = vmul.f32 %v1113, 1.442695
    %v1126 = vpow.pop %v1125
    %v1127 = vmul.f32 %v1114, 1.442695
    %v1128 = vpow.pop %v1127
    %v1129 = vmul.f32 %v1115, 1.442695
    %v1130 = vpow.pop %v1129
    %v1131 = vmul.f32 %v1116, 1.442695
    %v1132 = vpow.pop %v1131
    %v1133 = vadd.f32 %v1118, 1.0
    %v1134 = vadd.f32 %v1120, 1.0
    %v1135 = vadd.f32 %v1122, 1.0
    %v1136 = vadd.f32 %v1124, 1.0
    %v1137 = vadd.f32 %v1126, 1.0
    %v1138 = vadd.f32 %v1128, 1.0
    %v1139 = vadd.f32 %v1130, 1.0
    %v1140 = vadd.f32 %v1132, 1.0
    %v1141 = vrcp.pop %v1133
    %v1142 = vmul.f32 1.0, %v1141
    %v1143 = vrcp.pop %v1134
    %v1144 = vmul.f32 1.0, %v1143
    %v1145 = vrcp.pop %v1135
    %v1146 = vmul.f32 1.0, %v1145
    %v1147 = vrcp.pop %v1136
    %v1148 = vmul.f32 1.0, %v1147
    %v1149 = vrcp.pop %v1137
    %v1150 = vmul.f32 1.0, %v1149
    %v1151 = vrcp.pop %v1138
    %v1152 = vmul.f32 1.0, %v1151
    %v1153 = vrcp.pop %v1139
    %v1154 = vmul.f32 1.0, %v1153
    %v1155 = vrcp.pop %v1140
    %v1156 = vmul.f32 1.0, %v1155
    %v1157 = vmul.f32 %v635, %v1142
    %v1158 = vmul.f32 %v636, %v1144
    %v1159 = vmul.f32 %v637, %v1146
    %v1160 = vmul.f32 %v638, %v1148
    %v1161 = vmul.f32 %v639, %v1150
    %v1162 = vmul.f32 %v640, %v1152
    %v1163 = vmul.f32 %v641, %v1154
    %v1164 = vmul.f32 %v642, %v1156
    %s1165 = scalar_lea.vmem [#allocation5], 64
    %1166 = vst [vmem:[%s1165] sm:$0xff] %v1157
    %1167 = vst [vmem:[%s1165 + $0x8] sm:$0xff] %v1158
    %1168 = vst [vmem:[%s1165 + $0x10] sm:$0xff] %v1159
    %1169 = vst [vmem:[%s1165 + $0x18] sm:$0xff] %v1160
    %1170 = vst [vmem:[%s1165 + $0x20] sm:$0xff] %v1161
    %1171 = vst [vmem:[%s1165 + $0x28] sm:$0xff] %v1162
    %1172 = vst [vmem:[%s1165 + $0x30] sm:$0xff] %v1163
    %1173 = vst [vmem:[%s1165 + $0x38] sm:$0xff] %v1164
    // Predicated region
    $region22: #{tpu_custom_call.1} parent=1 // pred_check
      _
    $region23: #{tpu_custom_call.1} parent=1 // pred_check_branch
      %1175 = sbr.rel (0) target = $region25
    $region24: #{tpu_custom_call.1} parent=1 // pred_region
      %s1177 = ssub.s32 2048, 2048
      %1178 = vsyncadd [#allocation4], %s1177
      %s1179 = sshll.u32 [#allocation5], 4
      %s1180 = int_to_ptr.vmem [resolvable:$true] %s1179
      %1185 = dma.vmem_to_hbm [thread:$0]  %s1180, 2048, %s4, [#allocation4], 256, 256, 16
    $region25: #{tpu_custom_call.1} parent=1 // pred_fallthru
      _
    // Predicated region
    $region26: #{tpu_custom_call.1} parent=1 // pred_check
      _
    $region27: #{tpu_custom_call.1} parent=1 // pred_check_branch
      %1187 = sbr.rel (0) target = $region29
    $region28: #{tpu_custom_call.1} parent=1 // pred_region
      %1188 = dma.done [#allocation4], 2048
    $region29: #{tpu_custom_call.1} parent=1 // pred_fallthru
      _
    %1189 = vsyncpa [#allocation3], 1
    %1190 = vsyncpa [#allocation4], 1

</llo_original>
